<compile_context>
chip_gen: v5e
topology: v5e:2x2
jax: 0.10.0
libtpu: 0.0.40
codegen_flags: <defaults>
</compile_context>

<pallas_src>
import functools
import math

import jax
import jax.numpy as jnp
from jax.experimental import pallas as pl
from jax.experimental.pallas import tpu as pltpu

_MIB = 1024 * 1024
_LANES = 128


# --------------------------------------------------------------------------- #
# Generation-aware sizing
# --------------------------------------------------------------------------- #
@functools.lru_cache(maxsize=None)
def _vmem_plan():
    """Returns (vmem_limit_bytes, target_block_bytes, max_live_bytes).

    v5e/v6e: 128 MiB physical VMEM -> raise the scoped limit to 64 MiB and aim
    for ~4 MiB x blocks (>=1-2 MiB blocks reach ~85%+ of the HBM roofline).
    v7x: only 64 MiB physical but ~3.2 TB/s HBM per TC -> >=2 MiB blocks while
    keeping the total live footprint (2x in + 2x out double buffers + f32
    temporaries) comfortably under the 32 MiB scoped limit.
    """
    try:
        vmem_phys = int(getattr(pltpu.get_tpu_info(), "vmem_capacity_bytes",
                                64 * _MIB))
    except Exception:  # no hardware info -> be conservative (v7x-sized)
        vmem_phys = 64 * _MIB
    if vmem_phys >= 96 * _MIB:          # v5e / v6e class (128 MiB physical)
        return 64 * _MIB, 4 * _MIB, 48 * _MIB
    return 32 * _MIB, 2 * _MIB, 26 * _MIB   # v7x class (64 MiB physical)


def _pick_row_tile(rows, cols, itemsize, *, target_block_bytes, max_live_bytes,
                   min_grid=4):
    """Rows per grid step.

    Byte-targeted block size (amortizes the ~0.35 us per-grid-step overhead and
    keeps DMAs on the HBM roofline), capped by the live-VMEM budget.  A small
    min_grid keeps a few steps for pipeline overlap / v7x's two TensorCores,
    but never shrinks a block below ~1 MiB just to manufacture grid steps.
    """
    if rows <= 8:
        return rows                          # single block == full array dims
    sublane = 16 if itemsize == 2 else 8     # bf16 packs 16 rows per vreg
    row_bytes = cols * itemsize
    # 2x double-buffered (input + output) blocks + ~3 f32 temporaries/element.
    live_per_row = 4 * row_bytes + 3 * 4 * cols
    tile = max(1, target_block_bytes // row_bytes)
    tile = min(tile, max(1, max_live_bytes // live_per_row))
    grid_tile = int(pl.cdiv(rows, min_grid))
    if grid_tile * row_bytes >= 1 * _MIB:    # only if blocks stay >= ~1 MiB
        tile = min(tile, grid_tile)
    tile = max(sublane, (tile // sublane) * sublane)
    return rows if tile >= rows else tile


@functools.lru_cache(maxsize=None)
def _segment_matrix(g, features):
    """(128, 128) 0/1 block-diagonal segment matrix, cached per (g, F).

    Stored in bf16 (0/1 are exact in bf16) so the in-kernel segmented reduce
    runs as native single-pass bf16 matmuls on the MXU.
    """
    seg = jnp.kron(jnp.eye(g, dtype=jnp.float32),
                   jnp.ones((features, features), jnp.float32))
    return seg.astype(jnp.bfloat16)


# --------------------------------------------------------------------------- #
# Kernels
# --------------------------------------------------------------------------- #
def _layernorm_kernel(x_ref, w_ref, b_ref, o_ref, *, eps, inv_n, inv_nm1):
    """Generic path: one normalization group per row. x_ref: (R, F)."""
    x = x_ref[...].astype(jnp.float32)
    mean = jnp.sum(x, axis=-1, keepdims=True) * inv_n
    diff = x - mean
    # torch.std default: unbiased estimator (divide by N-1).
    var = jnp.sum(diff * diff, axis=-1, keepdims=True) * inv_nm1
    # Exact division on the small (R, 1) vector; the kernel is HBM-bound with
    # large VPU/EUP slack, so this is effectively free and keeps ~1e-5 accuracy.
    inv_std = 1.0 / (jnp.sqrt(var) + eps)
    w = w_ref[...].astype(jnp.float32)
    b = b_ref[...].astype(jnp.float32)
    o_ref[...] = (diff * inv_std * w + b).astype(o_ref.dtype)


def _seg_sum(v, seg_bf16):
    """Segmented sum + broadcast via MXU with explicit precision.

    The f32 operand is split into hi/lo bf16 parts (seg is exactly 0/1 in
    bf16), so both matmuls are native single-pass bf16 MXU ops accumulated in
    f32: only 2 MXU passes per reduce (fully hidden under HBM time on every
    generation) with ~2^-17 relative error instead of the ~2^-8 error of a
    single truncated-bf16 pass.
    """
    hi = v.astype(jnp.bfloat16)
    lo = (v - hi.astype(jnp.float32)).astype(jnp.bfloat16)
    return (jnp.dot(hi, seg_bf16, preferred_element_type=jnp.float32)
            + jnp.dot(lo, seg_bf16, preferred_element_type=jnp.float32))


def _layernorm_packed_kernel(x_ref, m_ref, w_ref, b_ref, o_ref,
                             *, eps, inv_n, inv_nm1):
    """Lane-packed path for features < 128.

    Each kernel row packs g = 128 // F original rows side by side along the
    128-lane axis. m_ref is a (128, 128) 0/1 block-diagonal "segment" matrix
    (bf16): x @ m gives every lane its own segment's sum (reduce + broadcast in
    one MXU pass), so all loads/stores and VPU work stay lane-dense.
    """
    x = x_ref[...].astype(jnp.float32)            # (R, 128) lane-dense
    m = m_ref[...]                                # (128, 128) bf16 0/1
    mean = _seg_sum(x, m) * inv_n
    diff = x - mean
    var = _seg_sum(diff * diff, m) * inv_nm1
    inv_std = 1.0 / (jnp.sqrt(var) + eps)         # exact; HBM-bound kernel
    w = w_ref[...].astype(jnp.float32)
    b = b_ref[...].astype(jnp.float32)
    o_ref[...] = (diff * inv_std * w + b).astype(o_ref.dtype)


# --------------------------------------------------------------------------- #
# Wrapper
# --------------------------------------------------------------------------- #
def layer_norm_pallas(x, weight, bias, eps=1e-6, row_tile=None):
    """x: (..., F); weight, bias: (F,). Normalizes over the last axis."""
    orig_shape = x.shape
    features = int(orig_shape[-1])
    if features < 2:
        # torch.std's unbiased (N-1) divisor is undefined / NaN for N == 1.
        raise ValueError("LayerNorm with unbiased std requires features >= 2.")
    rows = int(math.prod(orig_shape[:-1])) if len(orig_shape) > 1 else 1

    itemsize = jnp.dtype(x.dtype).itemsize
    eps = float(eps)
    inv_n = 1.0 / features
    inv_nm1 = 1.0 / (features - 1)
    vmem_limit, target_block, max_live = _vmem_plan()

    g = _LANES // features if features < _LANES else 0
    use_packed = (features < _LANES and _LANES % features == 0 and g > 1
                  and rows > 0 and rows % g == 0)

    if use_packed:
        n_rows = rows // g
        x2d = x.reshape(n_rows, _LANES)                      # free reshape
        # Tiled params are tiny; rebuilt per call since weight/bias values vary.
        w2d = jnp.tile(weight, g).reshape(1, _LANES)
        b2d = jnp.tile(bias, g).reshape(1, _LANES)
        seg = _segment_matrix(g, features)                   # cached constant
        tile = int(row_tile) if row_tile else _pick_row_tile(
            n_rows, _LANES, itemsize,
            target_block_bytes=target_block, max_live_bytes=max_live)
        grid = pl.cdiv(n_rows, tile)
        kernel = functools.partial(_layernorm_packed_kernel, eps=eps,
                                   inv_n=inv_n, inv_nm1=inv_nm1)
        out = pl.pallas_call(
            kernel,
            out_shape=jax.ShapeDtypeStruct((n_rows, _LANES), x.dtype),
            grid_spec=pltpu.PrefetchScalarGridSpec(
                num_scalar_prefetch=0,
                grid=(grid,),
                in_specs=[
                    # TODO(synk): if a v7x profile shows exposed input DMA, add
                    # pipeline_mode=pl.Buffered(3) here (one extra block of VMEM).
                    pl.BlockSpec((tile, _LANES), lambda i: (i, 0)),
                    pl.BlockSpec((_LANES, _LANES), lambda i: (0, 0)),
                    pl.BlockSpec((1, _LANES), lambda i: (0, 0)),
                    pl.BlockSpec((1, _LANES), lambda i: (0, 0)),
                ],
                out_specs=pl.BlockSpec((tile, _LANES), lambda i: (i, 0)),
            ),
            compiler_params=pltpu.CompilerParams(
                dimension_semantics=("parallel",),
                vmem_limit_bytes=vmem_limit),
        )(x2d, seg, w2d, b2d)
        return out.reshape(orig_shape)

    # Generic path: features is the lane axis (lane-dense whenever F is a
    # multiple of 128, which covers realistic BERT4NILM hidden sizes).
    # TODO(synk): F < 128 with rows % (128//F) != 0 stays lane-sparse; a
    # copy-based repacking of the ragged prefix costs about as much extra HBM
    # traffic as the sparsity it removes, so it is intentionally not done.
    x2d = x.reshape(rows, features)
    w2d = weight.reshape(1, features)
    b2d = bias.reshape(1, features)
    tile = int(row_tile) if row_tile else _pick_row_tile(
        rows, features, itemsize,
        target_block_bytes=target_block, max_live_bytes=max_live)
    grid = pl.cdiv(rows, tile)              # no concatenate padding: tail masked
    kernel = functools.partial(_layernorm_kernel, eps=eps,
                               inv_n=inv_n, inv_nm1=inv_nm1)
    out = pl.pallas_call(
        kernel,
        out_shape=jax.ShapeDtypeStruct((rows, features), x.dtype),
        grid_spec=pltpu.PrefetchScalarGridSpec(
            num_scalar_prefetch=0,
            grid=(grid,),
            in_specs=[
                pl.BlockSpec((tile, features), lambda i: (i, 0)),
                pl.BlockSpec((1, features), lambda i: (0, 0)),
                pl.BlockSpec((1, features), lambda i: (0, 0)),
            ],
            out_specs=pl.BlockSpec((tile, features), lambda i: (i, 0)),
        ),
        compiler_params=pltpu.CompilerParams(
            dimension_semantics=("parallel",),
            vmem_limit_bytes=vmem_limit),
    )(x2d, w2d, b2d)
    return out.reshape(orig_shape)


# --------------------------------------------------------------------------- #
# Reference + self-test
# --------------------------------------------------------------------------- #
def layer_norm_ref(x, weight, bias, eps=1e-6):
    x32 = x.astype(jnp.float32)
    mean = jnp.mean(x32, axis=-1, keepdims=True)
    diff = x32 - mean
    n = x.shape[-1]
    std = jnp.sqrt(jnp.sum(diff * diff, axis=-1, keepdims=True) / (n - 1))
    y = weight.astype(jnp.float32) * diff / (std + eps) + bias.astype(jnp.float32)
    return y.astype(x.dtype)


if __name__ == "__main__":
    key = jax.random.PRNGKey(0)
    k1, k2, k3 = jax.random.split(key, 3)

    # Primary case: BERT4NILM-style (batch, seq, hidden); F=32 < 128 exercises
    # the lane-packed path (4 original rows per 128-lane kernel row).
    batch, seq, hidden = 4, 8, 32
    x = jax.random.normal(k1, (batch, seq, hidden), dtype=jnp.float32)
    # Deterministic parameter init, matching nn.Parameter(torch.ones/zeros).
    weight = jnp.ones((hidden,), dtype=jnp.float32)
    bias = jnp.zeros((hidden,), dtype=jnp.float32)

    out = jax.block_until_ready(layer_norm_pallas(x, weight, bias, eps=1e-6))
    ref = layer_norm_ref(x, weight, bias, eps=1e-6)
    assert out.shape == x.shape
    # Exact division + hi/lo-split MXU reduce -> ~1e-5 level accuracy.
    assert jnp.allclose(out, ref, atol=1e-4, rtol=1e-4), \
        float(jnp.max(jnp.abs(out - ref)))

    # Secondary case: generic lane-dense path (F=256). row_tile=8 forces a
    # partial tail block (21 rows, grid=3) to validate cdiv-grid masking.
    x2 = jax.random.normal(k2, (3, 7, 256), dtype=jnp.float32)
    w2 = jnp.ones((256,), dtype=jnp.float32)
    b2 = jnp.zeros((256,), dtype=jnp.float32)
    out2 = jax.block_until_ready(
        layer_norm_pallas(x2, w2, b2, eps=1e-6, row_tile=8))
    ref2 = layer_norm_ref(x2, w2, b2, eps=1e-6)
    assert out2.shape == x2.shape
    assert jnp.allclose(out2, ref2, atol=1e-4, rtol=1e-4), \
        float(jnp.max(jnp.abs(out2 - ref2)))

    # Tertiary case: F < 128 with rows not divisible by g (falls back to the
    # generic path), checks correctness of the fallback.
    x3 = jax.random.normal(k3, (1, 5, 32), dtype=jnp.float32)
    out3 = jax.block_until_ready(layer_norm_pallas(x3, weight, bias, eps=1e-6))
    ref3 = layer_norm_ref(x3, weight, bias, eps=1e-6)
    assert out3.shape == x3.shape
    assert jnp.allclose(out3, ref3, atol=1e-4, rtol=1e-4), \
        float(jnp.max(jnp.abs(out3 - ref3)))

    print("KERNEL_OK")
</pallas_src>

<mosaic_0001>
module attributes {stable_mosaic.version = 11 : i64} {
  func.func @_layernorm_packed_kernel(%arg0: i32, %arg1: memref<8x128xf32, #tpu.memory_space<vmem>>, %arg2: memref<128x128xbf16, #tpu.memory_space<vmem>>, %arg3: memref<1x128xf32, #tpu.memory_space<vmem>>, %arg4: memref<1x128xf32, #tpu.memory_space<vmem>>, %arg5: memref<8x128xf32, #tpu.memory_space<vmem>>) attributes {dimension_semantics = [#tpu.dimension_semantics<parallel>], iteration_bounds = array<i64: 1>, scalar_prefetch = 0 : i64, scratch_operands = 0 : i64, tpu.core_type = #tpu.core_type<tc>, window_params = [{transform_indices = @transform_0, window_bounds = array<i64: 8, 128>}, {pipeline_mode = #tpu.pipeline_mode<synchronous>, transform_indices = @transform_1, window_bounds = array<i64: 128, 128>}, {pipeline_mode = #tpu.pipeline_mode<synchronous>, transform_indices = @transform_2, window_bounds = array<i64: 1, 128>}, {pipeline_mode = #tpu.pipeline_mode<synchronous>, transform_indices = @transform_3, window_bounds = array<i64: 1, 128>}, {transform_indices = @transform_4, window_bounds = array<i64: 8, 128>}]} {
    %c0 = arith.constant 0 : index
    %c0_0 = arith.constant 0 : index
    %0 = vector.load %arg1[%c0, %c0_0] : memref<8x128xf32, #tpu.memory_space<vmem>>, vector<8x128xf32>
    %c0_1 = arith.constant 0 : index
    %c0_2 = arith.constant 0 : index
    %1 = vector.load %arg2[%c0_1, %c0_2] : memref<128x128xbf16, #tpu.memory_space<vmem>>, vector<128x128xbf16>
    %2 = arith.truncf %0 : vector<8x128xf32> to vector<8x128xbf16>
    %3 = arith.extf %2 : vector<8x128xbf16> to vector<8x128xf32>
    %4 = arith.subf %0, %3 : vector<8x128xf32>
    %5 = arith.truncf %4 : vector<8x128xf32> to vector<8x128xbf16>
    %cst = arith.constant dense<0.000000e+00> : vector<8x128xf32>
    %6 = tpu.matmul %2, %1, %cst {dimension_numbers = #tpu.dot_dimension_numbers<[1], [0], [0], [1], [0, 0, 1, 1], [], []>} : vector<8x128xbf16>, vector<128x128xbf16>, vector<8x128xf32> -> vector<8x128xf32>
    %cst_3 = arith.constant dense<0.000000e+00> : vector<8x128xf32>
    %7 = tpu.matmul %5, %1, %cst_3 {dimension_numbers = #tpu.dot_dimension_numbers<[1], [0], [0], [1], [0, 0, 1, 1], [], []>} : vector<8x128xbf16>, vector<128x128xbf16>, vector<8x128xf32> -> vector<8x128xf32>
    %8 = arith.addf %6, %7 : vector<8x128xf32>
    %cst_4 = arith.constant 3.125000e-02 : f32
    %9 = vector.broadcast %cst_4 : f32 to vector<8x128xf32>
    %10 = arith.mulf %8, %9 : vector<8x128xf32>
    %11 = arith.subf %0, %10 : vector<8x128xf32>
    %12 = arith.mulf %11, %11 : vector<8x128xf32>
    %13 = arith.truncf %12 : vector<8x128xf32> to vector<8x128xbf16>
    %14 = arith.extf %13 : vector<8x128xbf16> to vector<8x128xf32>
    %15 = arith.subf %12, %14 : vector<8x128xf32>
    %16 = arith.truncf %15 : vector<8x128xf32> to vector<8x128xbf16>
    %cst_5 = arith.constant dense<0.000000e+00> : vector<8x128xf32>
    %17 = tpu.matmul %13, %1, %cst_5 {dimension_numbers = #tpu.dot_dimension_numbers<[1], [0], [0], [1], [0, 0, 1, 1], [], []>} : vector<8x128xbf16>, vector<128x128xbf16>, vector<8x128xf32> -> vector<8x128xf32>
    %cst_6 = arith.constant dense<0.000000e+00> : vector<8x128xf32>
    %18 = tpu.matmul %16, %1, %cst_6 {dimension_numbers = #tpu.dot_dimension_numbers<[1], [0], [0], [1], [0, 0, 1, 1], [], []>} : vector<8x128xbf16>, vector<128x128xbf16>, vector<8x128xf32> -> vector<8x128xf32>
    %19 = arith.addf %17, %18 : vector<8x128xf32>
    %cst_7 = arith.constant 0.0322580636 : f32
    %20 = vector.broadcast %cst_7 : f32 to vector<8x128xf32>
    %21 = arith.mulf %19, %20 : vector<8x128xf32>
    %22 = math.sqrt %21 : vector<8x128xf32>
    %cst_8 = arith.constant 9.99999997E-7 : f32
    %23 = vector.broadcast %cst_8 : f32 to vector<8x128xf32>
    %24 = arith.addf %22, %23 : vector<8x128xf32>
    %cst_9 = arith.constant 1.000000e+00 : f32
    %25 = vector.broadcast %cst_9 : f32 to vector<8x128xf32>
    %26 = arith.divf %25, %24 : vector<8x128xf32>
    %c0_10 = arith.constant 0 : index
    %c0_11 = arith.constant 0 : index
    %27 = vector.load %arg3[%c0_10, %c0_11] : memref<1x128xf32, #tpu.memory_space<vmem>>, vector<1x128xf32>
    %c0_12 = arith.constant 0 : index
    %c0_13 = arith.constant 0 : index
    %28 = vector.load %arg4[%c0_12, %c0_13] : memref<1x128xf32, #tpu.memory_space<vmem>>, vector<1x128xf32>
    %29 = arith.mulf %11, %26 : vector<8x128xf32>
    %30 = vector.broadcast %27 : vector<1x128xf32> to vector<8x128xf32>
    %31 = arith.mulf %29, %30 : vector<8x128xf32>
    %32 = vector.broadcast %28 : vector<1x128xf32> to vector<8x128xf32>
    %33 = arith.addf %31, %32 : vector<8x128xf32>
    %c0_14 = arith.constant 0 : index
    %c0_15 = arith.constant 0 : index
    %34 = vector.load %arg5[%c0_14, %c0_15] : memref<8x128xf32, #tpu.memory_space<vmem>>, vector<8x128xf32>
    tpu.vector_store %arg5[%c0_14, %c0_15], %33 {strides = array<i32>} : memref<8x128xf32, #tpu.memory_space<vmem>>, vector<8x128xf32>,
    return
  }
  func.func @transform_0(%arg0: i32) -> (i32, i32) {
    %c0_i32 = arith.constant 0 : i32
    %c0_i32_0 = arith.constant 0 : i32
    return %arg0, %c0_i32 : i32, i32
  }
  func.func @transform_1(%arg0: i32) -> (i32, i32) {
    %c0_i32 = arith.constant 0 : i32
    %c0_i32_0 = arith.constant 0 : i32
    %c0_i32_1 = arith.constant 0 : i32
    return %c0_i32, %c0_i32_0 : i32, i32
  }
  func.func @transform_2(%arg0: i32) -> (i32, i32) {
    %c0_i32 = arith.constant 0 : i32
    %c0_i32_0 = arith.constant 0 : i32
    %c0_i32_1 = arith.constant 0 : i32
    return %c0_i32, %c0_i32_0 : i32, i32
  }
  func.func @transform_3(%arg0: i32) -> (i32, i32) {
    %c0_i32 = arith.constant 0 : i32
    %c0_i32_0 = arith.constant 0 : i32
    %c0_i32_1 = arith.constant 0 : i32
    return %c0_i32, %c0_i32_0 : i32, i32
  }
  func.func @transform_4(%arg0: i32) -> (i32, i32) {
    %c0_i32 = arith.constant 0 : i32
    %c0_i32_0 = arith.constant 0 : i32
    return %arg0, %c0_i32 : i32, i32
  }
}

</mosaic_0001>

<llo_original>
// kernel: tpu_custom_call.1
$region0: #{tpu_custom_call.1}
  #allocation0 [shape = 'u32[]', space=smem, size = 0x4, offset = 0x4, fixed_abs, tag = 'smem constant byte address 0x4 - core index']
  #allocation1 [shape = 'u32[72,128]{1,0:T(1,128)}', space=vmem, size = 0x9000, scoped, tag = 'internal scratch']
  %s0 = inlined_call_operand.hbm [shape: f32[8,128], index: 0, kind: input, shape index: {}]
  %s1 = inlined_call_operand.hbm [shape: bf16[128,128], index: 1, kind: input, shape index: {}]
  %s2 = inlined_call_operand.vmem [shape: f32[1,128], index: 2, kind: input, shape index: {}]
  %s3 = inlined_call_operand.vmem [shape: f32[1,128], index: 3, kind: input, shape index: {}]
  %s4 = inlined_call_operand.hbm [shape: f32[8,128], index: 4, kind: output, shape index: {}]
  %s5 = sld [smem:[#allocation0]]
  $region34: #{tpu_custom_call.1} parent=0
    _
  %s7 = ssub.s32 1, %s5
  %s8 = scalar_select 0, %s7, %s5
  $region1: #{tpu_custom_call.1} parent=0
    #allocation2 [shape = 'u8[4096]{0}', space=vmem, size = 0x1000, scoped, tag = 'input window, operand 0, single buffered']
    #allocation3 [shape = 's32[1]{0}', space=sflag, size = 0x4, scoped, tag = 'scoped memory for tpu_custom_call.1']
    #allocation4 [shape = 's32[1]{0}', space=sflag, size = 0x4, scoped, tag = 'scoped memory for tpu_custom_call.1']
    #allocation5 [shape = 'u8[32768]{0}', space=vmem, size = 0x8000, scoped, tag = 'input window, operand 1, single buffered']
    #allocation6 [shape = 's32[1]{0}', space=sflag, size = 0x4, scoped, tag = 'scoped memory for tpu_custom_call.1']
    #allocation7 [shape = 'u8[4096]{0}', space=vmem, size = 0x1000, scoped, tag = 'output window, operand 0, single buffered']
    %9 = vsyncpa [#allocation3], 0
    %10 = vsyncpa [#allocation6], 0
    %11 = vsyncpa [#allocation4], 0
    // Predicated region
    $region2: #{tpu_custom_call.1} parent=1 // pred_check
      _
    $region3: #{tpu_custom_call.1} parent=1 // pred_check_branch
      %13 = sbr.rel (0) target = $region5
    $region4: #{tpu_custom_call.1} parent=1 // pred_region
      %15 = vsyncadd [#allocation3], 0
      %s17 = sshll.u32 %s0, 4
      %s18 = int_to_ptr.hbm [resolvable:$true] %s17
      %s19 = sshll.u32 [#allocation2], 4
      %s20 = int_to_ptr.vmem [resolvable:$true] %s19
      %22 = dma.hbm_to_vmem [thread:$0]  %s18, 128, %s20, [#allocation3]
    $region5: #{tpu_custom_call.1} parent=1 // pred_fallthru
      _
    // Predicated region
    $region6: #{tpu_custom_call.1} parent=1 // pred_check
      _
    $region7: #{tpu_custom_call.1} parent=1 // pred_check_branch
      %24 = sbr.rel (0) target = $region9
    $region8: #{tpu_custom_call.1} parent=1 // pred_region
      %26 = vsyncadd [#allocation6], 0
      %s27 = sshll.u32 %s1, 4
      %s28 = int_to_ptr.hbm [resolvable:$true] %s27
      %s29 = sshll.u32 [#allocation5], 4
      %s30 = int_to_ptr.vmem [resolvable:$true] %s29
      %35 = dma.hbm_to_vmem [thread:$0]  %s28, 1024, %s30, [#allocation6], 64, 64, 4
    $region9: #{tpu_custom_call.1} parent=1 // pred_fallthru
      _
    // Predicated region
    $region10: #{tpu_custom_call.1} parent=1 // pred_check
      _
    $region11: #{tpu_custom_call.1} parent=1 // pred_check_branch
      %37 = sbr.rel (0) target = $region13
    $region12: #{tpu_custom_call.1} parent=1 // pred_region
      _
    $region13: #{tpu_custom_call.1} parent=1 // pred_fallthru
      _
    // Predicated region
    $region14: #{tpu_custom_call.1} parent=1 // pred_check
      _
    $region15: #{tpu_custom_call.1} parent=1 // pred_check_branch
      %39 = sbr.rel (0) target = $region17
    $region16: #{tpu_custom_call.1} parent=1 // pred_region
      _
    $region17: #{tpu_custom_call.1} parent=1 // pred_fallthru
      _
    // Predicated region
    $region18: #{tpu_custom_call.1} parent=1 // pred_check
      _
    $region19: #{tpu_custom_call.1} parent=1 // pred_check_branch
      %41 = sbr.rel (0) target = $region21
    $region20: #{tpu_custom_call.1} parent=1 // pred_region
      %43 = dma.done [#allocation3], 128
    $region21: #{tpu_custom_call.1} parent=1 // pred_fallthru
      _
    // Predicated region
    $region22: #{tpu_custom_call.1} parent=1 // pred_check
      _
    $region23: #{tpu_custom_call.1} parent=1 // pred_check_branch
      %45 = sbr.rel (0) target = $region25
    $region24: #{tpu_custom_call.1} parent=1 // pred_region
      %47 = dma.done [#allocation6], 1024
    $region25: #{tpu_custom_call.1} parent=1 // pred_fallthru
      _
    %v48 = vld [vmem:[#allocation2] sm:$0xff]
    %v49 = vld [vmem:[#allocation5] sm:$0xf]
    %v50 = vld [vmem:[#allocation5 + $0x4] sm:$0xf]
    %v51 = vld [vmem:[#allocation5 + $0x8] sm:$0xf]
    %v52 = vld [vmem:[#allocation5 + $0xc] sm:$0xf]
    %v53 = vld [vmem:[#allocation5 + $0x10] sm:$0xf]
    %v54 = vld [vmem:[#allocation5 + $0x14] sm:$0xf]
    %v55 = vld [vmem:[#allocation5 + $0x18] sm:$0xf]
    %v56 = vld [vmem:[#allocation5 + $0x1c] sm:$0xf]
    %v57 = vld [vmem:[#allocation5 + $0x20] sm:$0xf]
    %v58 = vld [vmem:[#allocation5 + $0x24] sm:$0xf]
    %v59 = vld [vmem:[#allocation5 + $0x28] sm:$0xf]
    %v60 = vld [vmem:[#allocation5 + $0x2c] sm:$0xf]
    %v61 = vld [vmem:[#allocation5 + $0x30] sm:$0xf]
    %v62 = vld [vmem:[#allocation5 + $0x34] sm:$0xf]
    %v63 = vld [vmem:[#allocation5 + $0x38] sm:$0xf]
    %v64 = vld [vmem:[#allocation5 + $0x3c] sm:$0xf]
    %v65 = vpack.c.bf16 %v48, %v48
    %v66 = vunpack.c.l.bf16 %v65
    %v67 = vsub.f32 %v48, %v66
    %v68 = vpack.c.bf16 %v67, %v67
    %v85 = vunpack.c.l.b16 %v49
    %v86 = vunpack.c.l.b16 %v50
    %v87 = vunpack.c.l.b16 %v51
    %v88 = vunpack.c.l.b16 %v52
    %v89 = vunpack.c.l.b16 %v53
    %v90 = vunpack.c.l.b16 %v54
    %v91 = vunpack.c.l.b16 %v55
    %v92 = vunpack.c.l.b16 %v56
    %v93 = vunpack.c.l.b16 %v57
    %v94 = vunpack.c.l.b16 %v58
    %v95 = vunpack.c.l.b16 %v59
    %v96 = vunpack.c.l.b16 %v60
    %v97 = vunpack.c.l.b16 %v61
    %v98 = vunpack.c.l.b16 %v62
    %v99 = vunpack.c.l.b16 %v63
    %v100 = vunpack.c.l.b16 %v64
    %v101 = vpack.c.b16 %v86, %v85
    %v102 = vpack.c.b16 %v88, %v87
    %v103 = vpack.c.b16 %v90, %v89
    %v104 = vpack.c.b16 %v92, %v91
    %v105 = vpack.c.b16 %v94, %v93
    %v106 = vpack.c.b16 %v96, %v95
    %v107 = vpack.c.b16 %v98, %v97
    %v108 = vpack.c.b16 %v100, %v99
    %117 = vmatpush.bf16.msra.mxu0 %v108
    %118 = vmatpush.bf16.msra.mxu0 %v107
    %119 = vmatpush.bf16.msra.mxu0 %v106
    %120 = vmatpush.bf16.msra.mxu0 %v105
    %121 = vmatpush.bf16.msra.mxu0 %v104
    %122 = vmatpush.bf16.msra.mxu0 %v103
    %123 = vmatpush.bf16.msra.mxu0 %v102
    %124 = vmatpush.bf16.msra.mxu0 %v101
    %125 = vmatmul.bf16.gmra.mxu0 %v68
    %v126 = vpop.f32.mrf.mxu0
    %v127 = vadd.f32 0.0, %v126
    %v128 = vpop.f32.mrf.mxu0
    %129 = vdwg.mxu0
    %130 = vmatpush.bf16.msra.mxu0 %v108
    %131 = vmatpush.bf16.msra.mxu0 %v107
    %132 = vmatpush.bf16.msra.mxu0 %v106
    %133 = vmatpush.bf16.msra.mxu0 %v105
    %134 = vmatpush.bf16.msra.mxu0 %v104
    %135 = vmatpush.bf16.msra.mxu0 %v103
    %136 = vmatpush.bf16.msra.mxu0 %v102
    %137 = vmatpush.bf16.msra.mxu0 %v101
    %138 = vmatmul.bf16.gmra.mxu0 %v65
    %v139 = vpop.f32.mrf.mxu0
    %v140 = vadd.f32 %v127, %v139
    %v141 = vpop.f32.mrf.mxu0
    %142 = vdwg.mxu0
    %v143 = vmul.f32 %v140, 0.03125
    %v144 = vsub.f32 %v48, %v143
    %v145 = vmul.f32 %v144, %v144
    %v146 = vpack.c.bf16 %v145, %v145
    %v147 = vunpack.c.l.bf16 %v146
    %v148 = vsub.f32 %v145, %v147
    %v149 = vpack.c.bf16 %v148, %v148
    %150 = vmatpush.bf16.msra.mxu0 %v108
    %151 = vmatpush.bf16.msra.mxu0 %v107
    %152 = vmatpush.bf16.msra.mxu0 %v106
    %153 = vmatpush.bf16.msra.mxu0 %v105
    %154 = vmatpush.bf16.msra.mxu0 %v104
    %155 = vmatpush.bf16.msra.mxu0 %v103
    %156 = vmatpush.bf16.msra.mxu0 %v102
    %157 = vmatpush.bf16.msra.mxu0 %v101
    %158 = vmatmul.bf16.gmra.mxu0 %v149
    %v159 = vpop.f32.mrf.mxu0
    %v160 = vadd.f32 0.0, %v159
    %v161 = vpop.f32.mrf.mxu0
    %162 = vdwg.mxu0
    %163 = vmatpush.bf16.msra.mxu0 %v108
    %164 = vmatpush.bf16.msra.mxu0 %v107
    %165 = vmatpush.bf16.msra.mxu0 %v106
    %166 = vmatpush.bf16.msra.mxu0 %v105
    %167 = vmatpush.bf16.msra.mxu0 %v104
    %168 = vmatpush.bf16.msra.mxu0 %v103
    %169 = vmatpush.bf16.msra.mxu0 %v102
    %170 = vmatpush.bf16.msra.mxu0 %v101
    %171 = vmatmul.bf16.gmra.mxu0 %v146
    %v172 = vpop.f32.mrf.mxu0
    %v173 = vadd.f32 %v160, %v172
    %v174 = vpop.f32.mrf.mxu0
    %175 = vdwg.mxu0
    %v176 = vmul.f32 %v173, 0.032258064
    %v177 = vrsqrt.pop %v176
    %v178 = vmul.f32 %v177, %v176
    %v179 = vmul.f32 %v178, %v177
    %v180 = vmul.f32 0.5, %v179
    %v181 = vsub.f32 1.5, %v180
    %v182 = vmul.f32 %v177, %v181
    %v183 = vmul.f32 %v176, %v182
    %vm184 = vcmp.eq.f32.partialorder %v176, inf
    %v185 = vsel %vm184, %v176, %v183
    %vm186 = vcmp.eq.f32.partialorder %v176, 0.0
    %v187 = vand.u32 %v176, 2147483648
    %v188 = vsel %vm186, %v187, %v185
    %v189 = vadd.f32 %v188, 1e-06
    %v190 = vrcp.pop %v189
    %v191 = vmul.f32 %v189, %v190
    %v192 = vsub.f32 1.0, %v191
    %v193 = vmul.f32 %v190, %v192
    %v194 = vadd.f32 %v190, %v193
    %vm195 = vweird.f32 %v189
    %vm196 = vweird.f32 %v190
    %vm197 = vmor %vm195, %vm196
    %v198 = vsel %vm197, %v190, %v194
    %v199 = vand.u32 2147483647, %v189
    %vm200 = vcmp.eq.f32.partialorder %v199, 8.507059e+37
    %v201 = vand.u32 %v189, 2147483648
    %v202 = vor.u32 1.1754944e-38, %v201
    %v203 = vsel %vm200, %v202, %v198
    %v204 = vmul.f32 1.0, %v203
    %v205 = vld [vmem:[%s2] sm:$0x1]
    %v206 = vld [vmem:[%s3] sm:$0x1]
    %v207 = vmul.f32 %v144, %v204
    %v209 = vperm.slane %v205, 0
    %v211 = vmul.f32 %v207, %v209
    %v213 = vperm.slane %v206, 0
    %v215 = vadd.f32 %v211, %v213
    %216 = vst [vmem:[#allocation7] sm:$0xff] %v215
    // Predicated region
    $region26: #{tpu_custom_call.1} parent=1 // pred_check
      _
    $region27: #{tpu_custom_call.1} parent=1 // pred_check_branch
      %218 = sbr.rel (0) target = $region29
    $region28: #{tpu_custom_call.1} parent=1 // pred_region
      %220 = vsyncadd [#allocation4], 0
      %s222 = sshll.u32 [#allocation7], 4
      %s223 = int_to_ptr.vmem [resolvable:$true] %s222
      %s224 = sshll.u32 %s4, 4
      %s225 = int_to_ptr.hbm [resolvable:$true] %s224
      %227 = dma.vmem_to_hbm [thread:$0]  %s223, 128, %s225, [#allocation4]
    $region29: #{tpu_custom_call.1} parent=1 // pred_fallthru
      _
    // Predicated region
    $region30: #{tpu_custom_call.1} parent=1 // pred_check
      _
    $region31: #{tpu_custom_call.1} parent=1 // pred_check_branch
      %229 = sbr.rel (0) target = $region33
    $region32: #{tpu_custom_call.1} parent=1 // pred_region
      %231 = dma.done [#allocation4], 128
    $region33: #{tpu_custom_call.1} parent=1 // pred_fallthru
      _
    %232 = vsyncpa [#allocation3], 1
    %233 = vsyncpa [#allocation6], 1
    %234 = vsyncpa [#allocation4], 1

</llo_original>
